<compile_context>
chip_gen: v7x
topology: tpu7x:2x2x1
jax: 0.10.0
libtpu: 0.0.40
codegen_flags: <defaults>
</compile_context>

<pallas_src>
import functools

import jax
import jax.numpy as jnp
from jax.experimental import pallas as pl
from jax.experimental.pallas import tpu as pltpu


def _round_up(x, m):
    return ((x + m - 1) // m) * m


def _label_smoothing_kernel(out_ref, tgt_ref, loss_ref,
                            m_sc, se_sc, sx_sc, xt_sc,
                            *, eps, num_classes, ignore_index, block_c):
    k = pl.program_id(1)

    @pl.when(k == 0)
    def _():
        m_sc[...] = jnp.full_like(m_sc, -jnp.inf)
        se_sc[...] = jnp.zeros_like(se_sc)
        sx_sc[...] = jnp.zeros_like(sx_sc)
        xt_sc[...] = jnp.zeros_like(xt_sc)

    x = out_ref[...].astype(jnp.float32)            # (TB, TC) logits tile
    t = tgt_ref[...]                                # (TB, 1) int32 targets
    t_clean = jnp.where(t == ignore_index, 0, t)    # (TB, 1)

    tb, tc = x.shape
    cls_idx = k * block_c + jax.lax.broadcasted_iota(jnp.int32, (tb, tc), 1)
    hit = cls_idx == t_clean                        # at most one True per row overall

    # --- online logsumexp accumulation over the class axis ---
    m_prev = m_sc[...]
    m_new = jnp.maximum(m_prev, jnp.max(x, axis=-1, keepdims=True))
    se_sc[...] = (se_sc[...] * jnp.exp(m_prev - m_new)
                  + jnp.sum(jnp.exp(x - m_new), axis=-1, keepdims=True))
    m_sc[...] = m_new
    # plain running sums (independent of the max shift)
    sx_sc[...] = sx_sc[...] + jnp.sum(x, axis=-1, keepdims=True)
    xt_sc[...] = xt_sc[...] + jnp.sum(jnp.where(hit, x, 0.0), axis=-1, keepdims=True)

    @pl.when(k == pl.num_programs(1) - 1)
    def _():
        lse = m_sc[...] + jnp.log(se_sc[...])
        eps_c = eps / num_classes
        # closed form of -sum(smooth * log_softmax(x)):
        loss = ((1.0 - eps_c) * lse
                - eps_c * sx_sc[...]
                - (1.0 - eps - eps_c) * xt_sc[...])
        non_pad = (t != ignore_index).astype(jnp.float32)
        loss_ref[...] = loss * non_pad


def label_smoothing_loss(output, target, *, label_smoothing, tgt_vocab_size,
                         ignore_index=-100, block_b=None, block_c=None):
    """output: (B, C) float (any dtype), target: (B,) int -> loss: (B,) float32 (unreduced)."""
    assert 0.0 < label_smoothing <= 1.0
    B, C = output.shape
    assert C == tgt_vocab_size

    dtype_size = jnp.dtype(output.dtype).itemsize
    TILE_BUDGET = 4 << 20  # ~4 MiB per logits buffer (x2 for double buffering)

    # ---- class-axis tile: full C unless C is large and 128-divisible ----
    if block_c is None:
        block_c = C
        if C % 128 == 0:
            while block_c * 8 * dtype_size > TILE_BUDGET and block_c % 256 == 0:
                block_c //= 2
    assert block_c == C or (C % block_c == 0 and block_c % 128 == 0), \
        "block_c must be C or a 128-multiple divisor of C"

    # ---- batch-axis tile: multiple of 8, sized against the VMEM budget ----
    if block_b is None:
        rows = TILE_BUDGET // max(1, block_c * dtype_size)
        block_b = min(max(8, (rows // 8) * 8), 1024)
    block_b = max(8, (block_b // 8) * 8)           # sublane granularity
    block_b = min(block_b, _round_up(B, 8))        # don't exceed (padded) batch

    # ---- pad the batch so it divides evenly; padded rows are masked out ----
    B_pad = _round_up(B, block_b)
    target2d = target.astype(jnp.int32).reshape(B, 1)
    if B_pad != B:
        output = jnp.pad(output, ((0, B_pad - B), (0, 0)))
        target2d = jnp.pad(target2d, ((0, B_pad - B), (0, 0)),
                           constant_values=ignore_index)

    grid = (B_pad // block_b, C // block_c)

    # ---- explicit VMEM budget: double-buffered logits + small side buffers ----
    logits_bytes = 2 * block_b * block_c * dtype_size
    side_bytes = 12 * block_b * 128 * 4   # tgt/loss double-buffers + 4 scratch, lane-padded
    vmem_limit = int(1.25 * (logits_bytes + side_bytes)) + (2 << 20)
    vmem_limit = min(max(vmem_limit, 8 << 20), 100 << 20)

    kernel = functools.partial(
        _label_smoothing_kernel,
        eps=float(label_smoothing),
        num_classes=int(tgt_vocab_size),
        ignore_index=int(ignore_index),
        block_c=int(block_c),
    )

    loss2d = pl.pallas_call(
        kernel,
        out_shape=jax.ShapeDtypeStruct((B_pad, 1), jnp.float32),
        grid_spec=pltpu.PrefetchScalarGridSpec(
            num_scalar_prefetch=0,
            grid=grid,
            in_specs=[
                pl.BlockSpec((block_b, block_c), lambda i, k: (i, k)),
                pl.BlockSpec((block_b, 1), lambda i, k: (i, 0)),
            ],
            out_specs=pl.BlockSpec((block_b, 1), lambda i, k: (i, 0)),
            scratch_shapes=[pltpu.VMEM((block_b, 1), jnp.float32)] * 4,
        ),
        compiler_params=pltpu.CompilerParams(
            dimension_semantics=("parallel", "arbitrary"),
            vmem_limit_bytes=vmem_limit,
        ),
    )(output, target2d)

    return loss2d.reshape(B_pad)[:B]


def _reference(output, target, eps, num_classes, ignore_index):
    non_pad = (target != ignore_index).astype(jnp.float32)
    t = jnp.where(target == ignore_index, 0, target)
    one_hot = jax.nn.one_hot(t, num_classes, dtype=jnp.float32)
    one_hot = one_hot * (1.0 - eps) + (1.0 - one_hot) * eps / num_classes
    log_prb = jax.nn.log_softmax(output.astype(jnp.float32), axis=-1)
    loss = -(one_hot * log_prb).sum(axis=-1)
    return loss * non_pad


if __name__ == "__main__":
    key = jax.random.PRNGKey(0)
    eps = 0.1
    ignore_index = -100

    # --- test 1: small f32 logits, single class tile ---
    B, C = 8, 16
    k1, k2, k3, k4 = jax.random.split(key, 4)
    output = jax.random.normal(k1, (B, C), dtype=jnp.float32)
    target = jax.random.randint(k2, (B,), 0, C, dtype=jnp.int32)
    target = target.at[1].set(ignore_index).at[5].set(ignore_index)

    loss = label_smoothing_loss(output, target, label_smoothing=eps,
                                tgt_vocab_size=C, ignore_index=ignore_index)
    loss = jax.block_until_ready(loss)
    ref = _reference(output, target, eps, C, ignore_index)
    assert loss.shape == (B,)
    assert jnp.allclose(loss, ref, atol=1e-4, rtol=1e-4), (loss, ref)

    # --- test 2: bf16 logits, ragged batch, tiled class axis (online logsumexp path) ---
    B2, C2 = 12, 384
    out2 = jax.random.normal(k3, (B2, C2), dtype=jnp.bfloat16)
    tgt2 = jax.random.randint(k4, (B2,), 0, C2, dtype=jnp.int32)
    tgt2 = tgt2.at[0].set(ignore_index).at[7].set(ignore_index)

    loss2 = label_smoothing_loss(out2, tgt2, label_smoothing=eps,
                                 tgt_vocab_size=C2, ignore_index=ignore_index,
                                 block_c=128)
    loss2 = jax.block_until_ready(loss2)
    ref2 = _reference(out2, tgt2, eps, C2, ignore_index)
    assert loss2.shape == (B2,)
    assert jnp.allclose(loss2, ref2, atol=1e-3, rtol=1e-3), (loss2, ref2)

    print("KERNEL_OK")
</pallas_src>

<mosaic_0001>
module attributes {stable_mosaic.version = 11 : i64} {
  func.func @_label_smoothing_kernel(%arg0: i32, %arg1: i32, %arg2: memref<8x16xf32, #tpu.memory_space<vmem>>, %arg3: memref<8x1xi32, #tpu.memory_space<vmem>>, %arg4: memref<8x1xf32, #tpu.memory_space<vmem>>, %arg5: memref<8x1xf32, #tpu.memory_space<vmem>>, %arg6: memref<8x1xf32, #tpu.memory_space<vmem>>, %arg7: memref<8x1xf32, #tpu.memory_space<vmem>>, %arg8: memref<8x1xf32, #tpu.memory_space<vmem>>) attributes {dimension_semantics = [#tpu.dimension_semantics<parallel>, #tpu.dimension_semantics<arbitrary>], iteration_bounds = array<i64: 1, 1>, scalar_prefetch = 0 : i64, scratch_operands = 4 : i64, tpu.core_type = #tpu.core_type<tc>, window_params = [{transform_indices = @transform_0, window_bounds = array<i64: 8, 16>}, {transform_indices = @transform_1, window_bounds = array<i64: 8, 1>}, {transform_indices = @transform_2, window_bounds = array<i64: 8, 1>}]} {
    %c0_i32 = arith.constant 0 : i32
    %0 = arith.cmpi eq, %arg1, %c0_i32 : i32
    %1 = arith.extui %0 : i1 to i32
    %c0_i32_0 = arith.constant 0 : i32
    %2 = arith.cmpi ne, %1, %c0_i32_0 : i32
    scf.if %2 {
      %cst_27 = arith.constant 0xFF800000 : f32
      %46 = vector.broadcast %cst_27 : f32 to vector<8x1xf32>
      %c0_28 = arith.constant 0 : index
      %c0_29 = arith.constant 0 : index
      %47 = vector.load %arg5[%c0_28, %c0_29] : memref<8x1xf32, #tpu.memory_space<vmem>>, vector<8x1xf32>
      tpu.vector_store %arg5[%c0_28, %c0_29], %46 {strides = array<i32>} : memref<8x1xf32, #tpu.memory_space<vmem>>, vector<8x1xf32>,
      %cst_30 = arith.constant 0.000000e+00 : f32
      %48 = vector.broadcast %cst_30 : f32 to vector<8x1xf32>
      %c0_31 = arith.constant 0 : index
      %c0_32 = arith.constant 0 : index
      %49 = vector.load %arg6[%c0_31, %c0_32] : memref<8x1xf32, #tpu.memory_space<vmem>>, vector<8x1xf32>
      tpu.vector_store %arg6[%c0_31, %c0_32], %48 {strides = array<i32>} : memref<8x1xf32, #tpu.memory_space<vmem>>, vector<8x1xf32>,
      %cst_33 = arith.constant 0.000000e+00 : f32
      %50 = vector.broadcast %cst_33 : f32 to vector<8x1xf32>
      %c0_34 = arith.constant 0 : index
      %c0_35 = arith.constant 0 : index
      %51 = vector.load %arg7[%c0_34, %c0_35] : memref<8x1xf32, #tpu.memory_space<vmem>>, vector<8x1xf32>
      tpu.vector_store %arg7[%c0_34, %c0_35], %50 {strides = array<i32>} : memref<8x1xf32, #tpu.memory_space<vmem>>, vector<8x1xf32>,
      %cst_36 = arith.constant 0.000000e+00 : f32
      %52 = vector.broadcast %cst_36 : f32 to vector<8x1xf32>
      %c0_37 = arith.constant 0 : index
      %c0_38 = arith.constant 0 : index
      %53 = vector.load %arg8[%c0_37, %c0_38] : memref<8x1xf32, #tpu.memory_space<vmem>>, vector<8x1xf32>
      tpu.vector_store %arg8[%c0_37, %c0_38], %52 {strides = array<i32>} : memref<8x1xf32, #tpu.memory_space<vmem>>, vector<8x1xf32>,
    } else {
    }
    %c0 = arith.constant 0 : index
    %c0_1 = arith.constant 0 : index
    %3 = vector.load %arg2[%c0, %c0_1] : memref<8x16xf32, #tpu.memory_space<vmem>>, vector<8x16xf32>
    %c0_2 = arith.constant 0 : index
    %c0_3 = arith.constant 0 : index
    %4 = vector.load %arg3[%c0_2, %c0_3] : memref<8x1xi32, #tpu.memory_space<vmem>>, vector<8x1xi32>
    %c-100_i32 = arith.constant -100 : i32
    %5 = vector.broadcast %c-100_i32 : i32 to vector<8x1xi32>
    %6 = arith.cmpi eq, %4, %5 : vector<8x1xi32>
    %c0_i32_4 = arith.constant 0 : i32
    %7 = vector.broadcast %c0_i32_4 : i32 to vector<8x1xi32>
    %8 = arith.select %6, %7, %4 : vector<8x1xi1>, vector<8x1xi32>
    %c16_i32 = arith.constant 16 : i32
    %9 = arith.muli %arg1, %c16_i32 : i32
    %10 = tpu.iota {dimensions = array<i32: 1>} : vector<8x16xi32>
    %11 = vector.broadcast %9 : i32 to vector<8x16xi32>
    %12 = arith.addi %11, %10 : vector<8x16xi32>
    %13 = vector.broadcast %8 : vector<8x1xi32> to vector<8x16xi32>
    %14 = arith.cmpi eq, %12, %13 : vector<8x16xi32>
    %c0_5 = arith.constant 0 : index
    %c0_6 = arith.constant 0 : index
    %15 = vector.load %arg5[%c0_5, %c0_6] : memref<8x1xf32, #tpu.memory_space<vmem>>, vector<8x1xf32>
    %cst = arith.constant dense<0xFF800000> : vector<8xf32>
    %16 = vector.multi_reduction <maximumf>, %3, %cst [1] : vector<8x16xf32> to vector<8xf32>
    %17 = vector.shape_cast %16 : vector<8xf32> to vector<8x1xf32>
    %18 = arith.maximumf %15, %17 : vector<8x1xf32>
    %c0_7 = arith.constant 0 : index
    %c0_8 = arith.constant 0 : index
    %19 = vector.load %arg6[%c0_7, %c0_8] : memref<8x1xf32, #tpu.memory_space<vmem>>, vector<8x1xf32>
    %20 = arith.subf %15, %18 : vector<8x1xf32>
    %21 = math.exp %20 : vector<8x1xf32>
    %22 = arith.mulf %19, %21 : vector<8x1xf32>
    %23 = vector.broadcast %18 : vector<8x1xf32> to vector<8x16xf32>
    %24 = arith.subf %3, %23 : vector<8x16xf32>
    %25 = math.exp %24 : vector<8x16xf32>
    %cst_9 = arith.constant dense<0.000000e+00> : vector<8xf32>
    %26 = vector.multi_reduction <add>, %25, %cst_9 [1] : vector<8x16xf32> to vector<8xf32>
    %27 = vector.shape_cast %26 : vector<8xf32> to vector<8x1xf32>
    %28 = arith.addf %22, %27 : vector<8x1xf32>
    %c0_10 = arith.constant 0 : index
    %c0_11 = arith.constant 0 : index
    %29 = vector.load %arg6[%c0_10, %c0_11] : memref<8x1xf32, #tpu.memory_space<vmem>>, vector<8x1xf32>
    tpu.vector_store %arg6[%c0_10, %c0_11], %28 {strides = array<i32>} : memref<8x1xf32, #tpu.memory_space<vmem>>, vector<8x1xf32>,
    %c0_12 = arith.constant 0 : index
    %c0_13 = arith.constant 0 : index
    %30 = vector.load %arg5[%c0_12, %c0_13] : memref<8x1xf32, #tpu.memory_space<vmem>>, vector<8x1xf32>
    tpu.vector_store %arg5[%c0_12, %c0_13], %18 {strides = array<i32>} : memref<8x1xf32, #tpu.memory_space<vmem>>, vector<8x1xf32>,
    %c0_14 = arith.constant 0 : index
    %c0_15 = arith.constant 0 : index
    %31 = vector.load %arg7[%c0_14, %c0_15] : memref<8x1xf32, #tpu.memory_space<vmem>>, vector<8x1xf32>
    %cst_16 = arith.constant dense<0.000000e+00> : vector<8xf32>
    %32 = vector.multi_reduction <add>, %3, %cst_16 [1] : vector<8x16xf32> to vector<8xf32>
    %33 = vector.shape_cast %32 : vector<8xf32> to vector<8x1xf32>
    %34 = arith.addf %31, %33 : vector<8x1xf32>
    %c0_17 = arith.constant 0 : index
    %c0_18 = arith.constant 0 : index
    %35 = vector.load %arg7[%c0_17, %c0_18] : memref<8x1xf32, #tpu.memory_space<vmem>>, vector<8x1xf32>
    tpu.vector_store %arg7[%c0_17, %c0_18], %34 {strides = array<i32>} : memref<8x1xf32, #tpu.memory_space<vmem>>, vector<8x1xf32>,
    %c0_19 = arith.constant 0 : index
    %c0_20 = arith.constant 0 : index
    %36 = vector.load %arg8[%c0_19, %c0_20] : memref<8x1xf32, #tpu.memory_space<vmem>>, vector<8x1xf32>
    %cst_21 = arith.constant 0.000000e+00 : f32
    %37 = vector.broadcast %cst_21 : f32 to vector<8x16xf32>
    %38 = arith.select %14, %3, %37 : vector<8x16xi1>, vector<8x16xf32>
    %cst_22 = arith.constant dense<0.000000e+00> : vector<8xf32>
    %39 = vector.multi_reduction <add>, %38, %cst_22 [1] : vector<8x16xf32> to vector<8xf32>
    %40 = vector.shape_cast %39 : vector<8xf32> to vector<8x1xf32>
    %41 = arith.addf %36, %40 : vector<8x1xf32>
    %c0_23 = arith.constant 0 : index
    %c0_24 = arith.constant 0 : index
    %42 = vector.load %arg8[%c0_23, %c0_24] : memref<8x1xf32, #tpu.memory_space<vmem>>, vector<8x1xf32>
    tpu.vector_store %arg8[%c0_23, %c0_24], %41 {strides = array<i32>} : memref<8x1xf32, #tpu.memory_space<vmem>>, vector<8x1xf32>,
    %c0_i32_25 = arith.constant 0 : i32
    %43 = arith.cmpi eq, %arg1, %c0_i32_25 : i32
    %44 = arith.extui %43 : i1 to i32
    %c0_i32_26 = arith.constant 0 : i32
    %45 = arith.cmpi ne, %44, %c0_i32_26 : i32
    scf.if %45 {
      %c0_27 = arith.constant 0 : index
      %c0_28 = arith.constant 0 : index
      %46 = vector.load %arg5[%c0_27, %c0_28] : memref<8x1xf32, #tpu.memory_space<vmem>>, vector<8x1xf32>
      %c0_29 = arith.constant 0 : index
      %c0_30 = arith.constant 0 : index
      %47 = vector.load %arg6[%c0_29, %c0_30] : memref<8x1xf32, #tpu.memory_space<vmem>>, vector<8x1xf32>
      %48 = math.log %47 : vector<8x1xf32>
      %49 = arith.addf %46, %48 : vector<8x1xf32>
      %cst_31 = arith.constant 0.993749976 : f32
      %50 = vector.broadcast %cst_31 : f32 to vector<8x1xf32>
      %51 = arith.mulf %50, %49 : vector<8x1xf32>
      %c0_32 = arith.constant 0 : index
      %c0_33 = arith.constant 0 : index
      %52 = vector.load %arg7[%c0_32, %c0_33] : memref<8x1xf32, #tpu.memory_space<vmem>>, vector<8x1xf32>
      %cst_34 = arith.constant 6.250000e-03 : f32
      %53 = vector.broadcast %cst_34 : f32 to vector<8x1xf32>
      %54 = arith.mulf %53, %52 : vector<8x1xf32>
      %55 = arith.subf %51, %54 : vector<8x1xf32>
      %c0_35 = arith.constant 0 : index
      %c0_36 = arith.constant 0 : index
      %56 = vector.load %arg8[%c0_35, %c0_36] : memref<8x1xf32, #tpu.memory_space<vmem>>, vector<8x1xf32>
      %cst_37 = arith.constant 8.937500e-01 : f32
      %57 = vector.broadcast %cst_37 : f32 to vector<8x1xf32>
      %58 = arith.mulf %57, %56 : vector<8x1xf32>
      %59 = arith.subf %55, %58 : vector<8x1xf32>
      %c-100_i32_38 = arith.constant -100 : i32
      %60 = vector.broadcast %c-100_i32_38 : i32 to vector<8x1xi32>
      %61 = arith.cmpi ne, %4, %60 : vector<8x1xi32>
      %62 = arith.extui %61 : vector<8x1xi1> to vector<8x1xi32>
      %63 = arith.sitofp %62 : vector<8x1xi32> to vector<8x1xf32>
      %64 = arith.mulf %59, %63 : vector<8x1xf32>
      %c0_39 = arith.constant 0 : index
      %c0_40 = arith.constant 0 : index
      %65 = vector.load %arg4[%c0_39, %c0_40] : memref<8x1xf32, #tpu.memory_space<vmem>>, vector<8x1xf32>
      tpu.vector_store %arg4[%c0_39, %c0_40], %64 {strides = array<i32>} : memref<8x1xf32, #tpu.memory_space<vmem>>, vector<8x1xf32>,
    } else {
    }
    return
  }
  func.func @transform_0(%arg0: i32, %arg1: i32) -> (i32, i32) {
    %c0_i32 = arith.constant 0 : i32
    return %arg0, %arg1 : i32, i32
  }
  func.func @transform_1(%arg0: i32, %arg1: i32) -> (i32, i32) {
    %c0_i32 = arith.constant 0 : i32
    %c0_i32_0 = arith.constant 0 : i32
    return %arg0, %c0_i32 : i32, i32
  }
  func.func @transform_2(%arg0: i32, %arg1: i32) -> (i32, i32) {
    %c0_i32 = arith.constant 0 : i32
    %c0_i32_0 = arith.constant 0 : i32
    return %arg0, %c0_i32 : i32, i32
  }
}

</mosaic_0001>

<llo_original>
// kernel: tpu_custom_call.1
$region0: #{tpu_custom_call.1}
  #allocation0 [shape = 'u32[]', space=smem, size = 0x4, offset = 0x4, fixed_abs, tag = 'smem constant byte address 0x4 - core index']
  #allocation1 [shape = 'u32[144,128]{1,0:T(1,128)}', space=vmem, size = 0x12000, scoped, tag = 'internal scratch']
  #allocation2 [shape = 'f32[8,1]{1,0:T(8,128)}', space=vmem, size = 0x1000, scoped, tag = 'scratch operand']
  #allocation3 [shape = 'f32[8,1]{1,0:T(8,128)}', space=vmem, size = 0x1000, scoped, tag = 'scratch operand']
  #allocation4 [shape = 'f32[8,1]{1,0:T(8,128)}', space=vmem, size = 0x1000, scoped, tag = 'scratch operand']
  #allocation5 [shape = 'f32[8,1]{1,0:T(8,128)}', space=vmem, size = 0x1000, scoped, tag = 'scratch operand']
  %s0 = inlined_call_operand.vmem [shape: f32[8,16], index: 0, kind: input, shape index: {}]
  %s1 = inlined_call_operand.vmem [shape: s32[8,1], index: 1, kind: input, shape index: {}]
  %s2 = inlined_call_operand.vmem [shape: f32[8,1], index: 2, kind: output, shape index: {}]
  %s3 = sld [smem:[#allocation0]]
  $region26: #{tpu_custom_call.1} parent=0
    _
  %s5 = ssub.s32 1, %s3
  %s6 = scalar_select 0, %s5, %s3
  // Predicated region
  $region2: #{tpu_custom_call.1} parent=0 // pred_check
    _
  $region3: #{tpu_custom_call.1} parent=0 // pred_check_branch
    %8 = sbr.rel (0) target = $region5
  $region4: #{tpu_custom_call.1} parent=0 // pred_region
    _
  $region5: #{tpu_custom_call.1} parent=0 // pred_fallthru
    _
  // Predicated region
  $region6: #{tpu_custom_call.1} parent=0 // pred_check
    _
  $region7: #{tpu_custom_call.1} parent=0 // pred_check_branch
    %10 = sbr.rel (0) target = $region9
  $region8: #{tpu_custom_call.1} parent=0 // pred_region
    _
  $region9: #{tpu_custom_call.1} parent=0 // pred_fallthru
    _
  %p11 = scmp.eq.s32.totalorder 0, 0
  // Predicated region
  $region10: #{tpu_custom_call.1} parent=0 // pred_check
    %p12 = pneg %p11
  $region11: #{tpu_custom_call.1} parent=0 // pred_check_branch
    %14 = sbr.rel (%p12) target = $region13
  $region12: #{tpu_custom_call.1} parent=0 // pred_region
    %vm15 = vcmask 7168
    %16 = vst.msk [vmem:[#allocation2] sm:$0xff] %vm15, -inf
    %17 = vst.msk [vmem:[#allocation3] sm:$0xff] %vm15, 0.0
    %18 = vst.msk [vmem:[#allocation4] sm:$0xff] %vm15, 0.0
    %19 = vst.msk [vmem:[#allocation5] sm:$0xff] %vm15, 0.0
  $region13: #{tpu_custom_call.1} parent=0 // pred_fallthru
    _
  %v20 = vld [vmem:[%s0] sm:$0xff]
  %v21 = vld [vmem:[%s1] sm:$0xff]
  %vm22 = vcmp.eq.s32.totalorder %v21, 4294967196
  %v23 = vsel %vm22, 0, %v21
  %s24 = smul.u32 0, 16
  %v25 = vlaneseq
  %v26 = vand.u32 %v25, 127
  %v27 = vstv %s24
  %v28 = vadd.s32 %v27, %v26
  %29 = vset.pattern.permute.xlu0 0
  %30 = vperm.xlu0 %29, %v23
  %v31 = vpop.permute.xlu0 %30
  %vm32 = vcmp.eq.s32.totalorder %v28, %v31
  %v33 = vld [vmem:[#allocation2] sm:$0xff]
  %vm34 = vcmask 130048
  %v35 = vsel %vm34, %v20, -inf
  %36 = vmax.xlane.f32.xlu0 %v35
  %v37 = vpop.xlane.xlu0 %36
  %v38 = vmax.f32 %v33, %v37
  %v39 = vld [vmem:[#allocation3] sm:$0xff]
  %v40 = vsub.f32 %v33, %v38
  %v41 = vmul.f32 %v40, 1.442695
  %v42 = vpow.pop %v41
  %v43 = vmul.f32 %v39, %v42
  %45 = vset.pattern.permute.xlu0 0
  %46 = vperm.xlu0 %45, %v38
  %v47 = vpop.permute.xlu0 %46
  %v49 = vsub.f32 %v20, %v47
  %v50 = vmul.f32 %v49, 1.442695
  %v51 = vpow.pop %v50
  %v52 = vsel %vm34, %v51, 0.0
  %53 = vadd.xlane.f32.xlu0 %v52
  %v54 = vpop.xlane.xlu0 %53
  %v55 = vadd.f32 %v43, %v54
  %vm56 = vcmask 7168
  %57 = vst.msk [vmem:[#allocation3] sm:$0xff] %vm56, %v55
  %58 = vst.msk [vmem:[#allocation2] sm:$0xff] %vm56, %v38
  %v59 = vld [vmem:[#allocation4] sm:$0xff]
  %v60 = vsel %vm34, %v20, 0.0
  %61 = vadd.xlane.f32.xlu0 %v60
  %v62 = vpop.xlane.xlu0 %61
  %v63 = vadd.f32 %v59, %v62
  %64 = vst.msk [vmem:[#allocation4] sm:$0xff] %vm56, %v63
  %v65 = vld [vmem:[#allocation5] sm:$0xff]
  %v66 = vsel %vm32, %v20, 0.0
  %v67 = vsel %vm34, %v66, 0.0
  %68 = vadd.xlane.f32.xlu0 %v67
  %v69 = vpop.xlane.xlu0 %68
  %v70 = vadd.f32 %v65, %v69
  %71 = vst.msk [vmem:[#allocation5] sm:$0xff] %vm56, %v70
  // Predicated region
  $region14: #{tpu_custom_call.1} parent=0 // pred_check
    %p72 = pneg %p11
  $region15: #{tpu_custom_call.1} parent=0 // pred_check_branch
    %74 = sbr.rel (%p72) target = $region17
  $region16: #{tpu_custom_call.1} parent=0 // pred_region
    %v75 = vld [vmem:[#allocation2] sm:$0xff]
    %v76 = vld [vmem:[#allocation3] sm:$0xff]
    %v77 = vlog2.pop %v76
    %v78 = vmul.f32 %v77, 0.6931472
    %v79 = vadd.f32 %v75, %v78
    %v80 = vmul.f32 %v79, 0.99375
    %v81 = vld [vmem:[#allocation4] sm:$0xff]
    %v82 = vmul.f32 %v81, 0.00625
    %v83 = vsub.f32 %v80, %v82
    %v84 = vld [vmem:[#allocation5] sm:$0xff]
    %v85 = vmul.f32 %v84, 0.89375
    %v86 = vsub.f32 %v83, %v85
    %vm87 = vcmp.ne.s32.totalorder %v21, 4294967196
    %v88 = vsel %vm87, 1, 0
    %v89 = vcvt.s32.f32 %v88
    %v90 = vmul.f32 %v86, %v89
    %91 = vst.msk [vmem:[%s2] sm:$0xff] %vm56, %v90
  $region17: #{tpu_custom_call.1} parent=0 // pred_fallthru
    _
  // Predicated region
  $region18: #{tpu_custom_call.1} parent=0 // pred_check
    _
  $region19: #{tpu_custom_call.1} parent=0 // pred_check_branch
    %93 = sbr.rel (0) target = $region21
  $region20: #{tpu_custom_call.1} parent=0 // pred_region
    _
  $region21: #{tpu_custom_call.1} parent=0 // pred_fallthru
    _
  // Predicated region
  $region22: #{tpu_custom_call.1} parent=0 // pred_check
    _
  $region23: #{tpu_custom_call.1} parent=0 // pred_check_branch
    %95 = sbr.rel (0) target = $region25
  $region24: #{tpu_custom_call.1} parent=0 // pred_region
    _
  $region25: #{tpu_custom_call.1} parent=0 // pred_fallthru
    _

</llo_original>
